<compile_context>
chip_gen: v7x
topology: tpu7x:2x2x1
jax: 0.10.0
libtpu: 0.0.40
codegen_flags: <defaults>
</compile_context>

<pallas_src>
import functools

import numpy as np
import jax
import jax.numpy as jnp
from jax.experimental import pallas as pl
from jax.experimental.pallas import tpu as pltpu


# ----------------------------------------------------------------------------
# Pallas matmul kernel (backbone stand-in: template patch embedding)
# ----------------------------------------------------------------------------
def _matmul_kernel(a_ref, b_ref, o_ref):
    o_ref[...] = jnp.dot(a_ref[...], b_ref[...],
                         preferred_element_type=jnp.float32).astype(o_ref.dtype)


def pallas_matmul(a, b, tm_cap=512, out_dtype=jnp.bfloat16):
    """Row-blocked matmul; bf16 inputs, f32 MXU accumulation, bf16 output.

    M is split into at least two blocks whenever possible so both of v7x's
    TensorCores get work; the extra pipeline step costs ~0.35us on the
    single-TC v5e/v6e generations, which is negligible.
    """
    m, k = a.shape
    k2, n = b.shape
    assert k == k2
    half = -(-m // 2)                       # ceil(m / 2)
    half = max(8, -(-half // 8) * 8)        # round up to a sublane multiple
    tm_eff = min(tm_cap, half, m)
    return pl.pallas_call(
        _matmul_kernel,
        out_shape=jax.ShapeDtypeStruct((m, n), out_dtype),
        grid=(pl.cdiv(m, tm_eff),),
        in_specs=[pl.BlockSpec((tm_eff, k), lambda i: (i, 0)),
                  pl.BlockSpec((k, n), lambda i: (0, 0))],
        out_specs=pl.BlockSpec((tm_eff, n), lambda i: (i, 0)),
        compiler_params=pltpu.CompilerParams(
            dimension_semantics=("parallel",)),
    )(a, b)


# ----------------------------------------------------------------------------
# Search-key projection kernel: emits keys already transposed to (D, Ns)
# ----------------------------------------------------------------------------
def _search_key_kernel(wt_ref, p_ref, o_ref):
    # keyt (D, Ns) = w_qk^T (D, P) contracted with patches (Ns, P) over P
    # (q @ k^T form -- no explicit transpose, no host swapaxes afterwards).
    kt = jax.lax.dot_general(
        wt_ref[...], p_ref[...], (((1,), (1,)), ((), ())),
        preferred_element_type=jnp.float32)
    o_ref[...] = kt.astype(o_ref.dtype)


def search_key_matmul(s_patches2d, w_qk_t, *, ns):
    """(B*Ns, P) patches x (D, P) folded embed+key weights -> (B*D, Ns) bf16."""
    bn, pdim = s_patches2d.shape
    d = w_qk_t.shape[0]
    b = bn // ns
    return pl.pallas_call(
        _search_key_kernel,
        out_shape=jax.ShapeDtypeStruct((b * d, ns), jnp.bfloat16),
        grid=(b,),
        in_specs=[pl.BlockSpec((d, pdim), lambda i: (0, 0)),
                  pl.BlockSpec((ns, pdim), lambda i: (i, 0))],
        out_specs=pl.BlockSpec((d, ns), lambda i: (i, 0)),
        compiler_params=pltpu.CompilerParams(
            dimension_semantics=("parallel",)),
    )(w_qk_t, s_patches2d)


# ----------------------------------------------------------------------------
# Main APN kernel: prototype -> attention -> dense blur -> softmax -> CoM
# (one grid step covers the whole batch; every ref is a plain 2-D tile)
# ----------------------------------------------------------------------------
def _apn_kernel(wbd_ref, tpl_ref, keyt_ref, blur_ref, coords_ref,
                prob_ref, stats_ref, *, h_t, w_t, h_s, w_s, stats_w):
    b = wbd_ref.shape[0]
    d = tpl_ref.shape[1]

    # --- prototype for all batches: ONE matmul (mask normalization, 1/T
    #     average and head_dim**-0.5/num_heads scale pre-folded on the host,
    #     block-diagonal over batch) ---------------------------------------
    proto = jnp.dot(wbd_ref[...], tpl_ref[...],
                    preferred_element_type=jnp.float32)           # (B, D) f32

    # --- prototype vs per-patch search keys.  keys arrive pre-transposed and
    #     stacked as (B*D, Ns); expand proto to block-diagonal (B, B*D) so the
    #     score is another single lane-dense matmul -> (B, Ns). --------------
    proto_bd = jnp.concatenate([proto] * b, axis=1)               # (B, B*D)
    row = jax.lax.broadcasted_iota(jnp.int32, proto_bd.shape, 0)
    col = jax.lax.broadcasted_iota(jnp.int32, proto_bd.shape, 1)
    proto_bd = jnp.where(col // d == row, proto_bd, 0.0)
    att = jnp.dot(proto_bd.astype(jnp.bfloat16), keyt_ref[...],
                  preferred_element_type=jnp.float32)             # (B, Ns)

    # --- dense 5x5 reflect-pad gaussian blur: one (B,Ns)@(Ns,Ns) matmul -----
    blurred = jnp.dot(att.astype(jnp.bfloat16), blur_ref[...],
                      preferred_element_type=jnp.float32)         # (B, Ns)

    # --- softmax over the flat Hs*Ws axis (matches reference: blur the raw
    #     logits, then flat softmax) -----------------------------------------
    mx = jnp.max(blurred, axis=1, keepdims=True)
    e = jnp.exp(blurred - mx)
    prob = e / jnp.sum(e, axis=1, keepdims=True)                  # (B, Ns)

    # --- center-of-mass stats on the flat row (coordinate rows precomputed;
    #     second moments via E[y^2]-E[y]^2 so all reductions are independent)-
    yy = coords_ref[0:1, :]                                       # (1, Ns)
    xx = coords_ref[1:2, :]
    py = prob * yy
    px = prob * xx
    com_y = jnp.sum(py, axis=1, keepdims=True)                    # (B, 1)
    com_x = jnp.sum(px, axis=1, keepdims=True)
    ey2 = jnp.sum(py * yy, axis=1, keepdims=True)
    ex2 = jnp.sum(px * xx, axis=1, keepdims=True)
    std_y = jnp.sqrt(jnp.maximum(ey2 - com_y * com_y, 0.0))
    std_x = jnp.sqrt(jnp.maximum(ex2 - com_x * com_x, 0.0))

    win_h = jnp.clip(jnp.round(2.0 * std_y), float(h_t), float(h_s))
    win_w = jnp.clip(jnp.round(2.0 * std_x), float(w_t), float(w_s))
    best_y = jnp.maximum(jnp.round(com_y - win_h * 0.5), 0.0)
    best_x = jnp.maximum(jnp.round(com_x - win_w * 0.5), 0.0)
    best_y = jnp.minimum(best_y, float(h_s) - win_h)
    best_x = jnp.minimum(best_x, float(w_s) - win_w)

    # window confidence == integral-image window sum == masked prob sum
    in_win = ((yy >= best_y) & (yy < best_y + win_h) &
              (xx >= best_x) & (xx < best_x + win_w))             # (B, Ns)
    conf = jnp.sum(jnp.where(in_win, prob, 0.0), axis=1, keepdims=True)

    prob_ref[...] = prob                                          # lane-dense

    lane = jax.lax.broadcasted_iota(jnp.int32, (1, stats_w), 1)
    stats_ref[...] = (jnp.where(lane == 0, best_x, 0.0) +
                      jnp.where(lane == 1, best_y, 0.0) +
                      jnp.where(lane == 2, win_w, 0.0) +
                      jnp.where(lane == 3, win_h, 0.0) +
                      jnp.where(lane == 4, conf, 0.0))


def run_apn_kernel(wbd, tpl2d, keyt2d, blur, coords, *, h_t, w_t, h_s, w_s):
    b, btnt = wbd.shape
    d = tpl2d.shape[1]
    ns = keyt2d.shape[1]
    stats_w = 128  # lane-dense stats row: [best_x, best_y, win_w, win_h, conf]
    kernel = functools.partial(_apn_kernel, h_t=h_t, w_t=w_t, h_s=h_s, w_s=w_s,
                               stats_w=stats_w)
    # Whole batch in a single grid step (overhead-bound kernel; one step saves
    # (B-1) pipeline-step overheads on single-TC v5e/v6e and keeps the blur
    # matrix resident).  For large B on multi-TC v7x, re-grid over batch blocks.
    return pl.pallas_call(
        kernel,
        out_shape=(jax.ShapeDtypeStruct((b, ns), jnp.float32),
                   jax.ShapeDtypeStruct((b, stats_w), jnp.float32)),
        grid=(1,),
        in_specs=[
            pl.BlockSpec((b, btnt), lambda i: (0, 0)),        # block-diag weights
            pl.BlockSpec((btnt, d), lambda i: (0, 0)),        # template embeddings
            pl.BlockSpec((b * d, ns), lambda i: (0, 0)),      # keys, pre-transposed
            pl.BlockSpec((ns, ns), lambda i: (0, 0)),         # dense blur matrix
            pl.BlockSpec((2, ns), lambda i: (0, 0)),          # [yy; xx] coord rows
        ],
        out_specs=(pl.BlockSpec((b, ns), lambda i: (0, 0)),
                   pl.BlockSpec((b, stats_w), lambda i: (0, 0))),
        compiler_params=pltpu.CompilerParams(
            dimension_semantics=("arbitrary",)),
    )(wbd, tpl2d, keyt2d, blur, coords)


# ----------------------------------------------------------------------------
# Glue: patches, mask weights, blur matrix, coordinate rows, crop + resize
# ----------------------------------------------------------------------------
def images_to_patches(x, p):
    n, c, h, w = x.shape
    x = x.reshape(n, c, h // p, p, w // p, p)
    x = x.transpose(0, 2, 4, 1, 3, 5)              # (n, h/p, w/p, c, p, p)
    return x.reshape(n, (h // p) * (w // p), c * p * p)


def build_blockdiag_weights(annos, h_t, w_t, scale_total):
    """Fold patch mask / count / 1/T average / attention scale into a
    block-diagonal bf16 weight matrix (B, B*T*Nt) for the prototype matmul."""
    # annos: (T, B, 4) normalized [x, y, w, h]; int() truncation == floor for
    # the non-negative normalized boxes used here.
    t_n, b = annos.shape[0], annos.shape[1]
    x1 = jnp.floor(annos[..., 0] * w_t).astype(jnp.int32)
    y1 = jnp.floor(annos[..., 1] * h_t).astype(jnp.int32)
    x2 = jnp.floor((annos[..., 0] + annos[..., 2]) * w_t).astype(jnp.int32)
    y2 = jnp.floor((annos[..., 1] + annos[..., 3]) * h_t).astype(jnp.int32)
    rows = jnp.arange(h_t)[None, None, :, None]
    cols = jnp.arange(w_t)[None, None, None, :]
    m = ((rows >= y1[..., None, None]) & (rows < y2[..., None, None]) &
         (cols >= x1[..., None, None]) & (cols < x2[..., None, None]))
    m = m.astype(jnp.float32).reshape(t_n, b, h_t * w_t)    # (T, B, Nt)
    m = jnp.transpose(m, (1, 0, 2))                         # (B, T, Nt)
    counts = jnp.sum(m, axis=2, keepdims=True)              # (B, T, 1)
    w = m * (scale_total / t_n) / (counts + 1e-6)           # fold 1/T + attn scale
    w = w.reshape(b, t_n * h_t * w_t)                       # (B, T*Nt)
    eye = jnp.eye(b, dtype=w.dtype)
    wbd = (eye[:, :, None] * w[:, None, :]).reshape(b, b * t_n * h_t * w_t)
    return wbd.astype(jnp.bfloat16)


def _gaussian_kernel1d(ksize, sigma):
    half = (ksize - 1) * 0.5
    xs = np.linspace(-half, half, ksize)
    pdf = np.exp(-0.5 * (xs / sigma) ** 2)
    return pdf / pdf.sum()


def _blur_matrix_1d(n, ksize, sigma):
    k1d = _gaussian_kernel1d(ksize, sigma)
    m = np.zeros((n, n), dtype=np.float64)
    for i in range(n):
        for t in range(ksize):
            j = i + t - ksize // 2
            if j < 0:              # reflect padding (torchvision gaussian_blur)
                j = -j
            elif j >= n:
                j = 2 * n - 2 - j
            m[i, j] += k1d[t]
    return m


def make_dense_blur_matrix(h_s, w_s, ksize=5):
    """Dense (Ns, Ns) blur so blurred_flat = att_flat @ M; M = kron(By, Bx)^T.
    At Ns up to a few thousand this stays comfortably VMEM-resident in bf16;
    fall back to the separable form only for much larger search grids."""
    sigma = 0.3 * ((ksize - 1) * 0.5 - 1) + 0.8    # torchvision default sigma
    by = _blur_matrix_1d(h_s, ksize, sigma)
    bx = _blur_matrix_1d(w_s, ksize, sigma)
    return jnp.asarray(np.kron(by, bx).T, dtype=jnp.bfloat16)


def make_coord_rows(h_s, w_s):
    yy = np.repeat(np.arange(h_s, dtype=np.float32), w_s)
    xx = np.tile(np.arange(w_s, dtype=np.float32), h_s)
    return jnp.asarray(np.stack([yy, xx], axis=0))          # (2, Ns)


def _bilinear_crop_resize(img, y0, x0, h, w, out_size):
    # img: (C, H, W); (y0, x0, h, w): pixel crop window; bilinear resize,
    # align_corners=False (F.interpolate semantics).
    # TODO(synk): torchvision resize antialias (low-pass on downscale) is not modeled.
    hf = h.astype(jnp.float32)
    wf = w.astype(jnp.float32)
    ii = jnp.arange(out_size, dtype=jnp.float32)
    sy = jnp.maximum((ii + 0.5) * hf / out_size - 0.5, 0.0)
    sx = jnp.maximum((ii + 0.5) * wf / out_size - 0.5, 0.0)
    y_lo = jnp.floor(sy).astype(jnp.int32)
    x_lo = jnp.floor(sx).astype(jnp.int32)
    ty = sy - y_lo.astype(jnp.float32)
    tx = sx - x_lo.astype(jnp.float32)
    y_hi = jnp.minimum(y_lo + 1, h - 1)
    x_hi = jnp.minimum(x_lo + 1, w - 1)
    rows_lo = img[:, y0 + y_lo, :]
    rows_hi = img[:, y0 + y_hi, :]
    p00 = rows_lo[:, :, x0 + x_lo]
    p01 = rows_lo[:, :, x0 + x_hi]
    p10 = rows_hi[:, :, x0 + x_lo]
    p11 = rows_hi[:, :, x0 + x_hi]
    top = p00 * (1.0 - tx)[None, None, :] + p01 * tx[None, None, :]
    bot = p10 * (1.0 - tx)[None, None, :] + p11 * tx[None, None, :]
    return top * (1.0 - ty)[None, :, None] + bot * ty[None, :, None]


# ----------------------------------------------------------------------------
# Forward pass
# ----------------------------------------------------------------------------
def dora_apn_forward(params, template_imgs, search_frame, template_annos, cfg):
    # TODO(synk): only the 'center_of_mass' cropping scheme is implemented
    # (the default); the 'sliding_window' branch of the PyTorch module is not.
    p = cfg["patch_size"]
    d = cfg["embed_dim"]
    num_heads = cfg["num_heads"]
    head_dim = d // num_heads
    tpl_out = cfg["template_size_out"]

    t_n, b, c, ht_px, wt_px = template_imgs.shape
    hs_px, ws_px = search_frame.shape[-2], search_frame.shape[-1]
    h_t, w_t = ht_px // p, wt_px // p
    h_s, w_s = hs_px // p, ws_px // p
    nt, ns = h_t * w_t, h_s * w_s

    # --- backbone stand-in weights (bf16 MXU operands) -----------------------
    w_embed_b = params["w_embed"].astype(jnp.bfloat16)
    # Fold the key projection into the patch embedding and pre-transpose, so
    # the search branch is a single kernel that writes (D, Ns) directly.
    w_qk_t_b = (params["w_embed"] @ params["w_key"]).T.astype(jnp.bfloat16)

    # --- template branch: order rows batch-major (B, T, Nt) so the raw 2-D
    #     embedding feeds the block-diagonal prototype matmul with no reshape.
    tpl_imgs_bt = jnp.transpose(template_imgs, (1, 0, 2, 3, 4)).reshape(
        b * t_n, c, ht_px, wt_px)
    tpl_patches = images_to_patches(tpl_imgs_bt, p).astype(jnp.bfloat16)
    tpl_emb2d = pallas_matmul(tpl_patches.reshape(b * t_n * nt, -1),
                              w_embed_b)                       # (B*T*Nt, D) bf16

    # --- search branch: keys emitted pre-transposed/stacked as (B*D, Ns) -----
    s_patches2d = images_to_patches(search_frame, p).astype(
        jnp.bfloat16).reshape(b * ns, -1)
    keyt2d = search_key_matmul(s_patches2d, w_qk_t_b, ns=ns)   # (B*D, Ns) bf16

    # --- host-precomputed constants ------------------------------------------
    scale_total = (head_dim ** -0.5) / num_heads   # per-head scale x mean over heads
    wbd = build_blockdiag_weights(template_annos, h_t, w_t, scale_total)
    blur = make_dense_blur_matrix(h_s, w_s)                    # (Ns, Ns) bf16
    coords = make_coord_rows(h_s, w_s)                         # (2, Ns) f32

    # --- APN hot path (single Pallas kernel, whole batch in one step) --------
    prob_flat, stats = run_apn_kernel(wbd, tpl_emb2d, keyt2d, blur, coords,
                                      h_t=h_t, w_t=w_t, h_s=h_s, w_s=w_s)
    prob_map = prob_flat.reshape(b, h_s, w_s)

    best_x = stats[:, 0].astype(jnp.int32)
    best_y = stats[:, 1].astype(jnp.int32)
    win_w = stats[:, 2].astype(jnp.int32)
    win_h = stats[:, 3].astype(jnp.int32)
    confidence = stats[:, 4]

    crop_fn = functools.partial(_bilinear_crop_resize, out_size=tpl_out)
    templates = jax.vmap(crop_fn)(search_frame, best_y * p, best_x * p,
                                  win_h * p, win_w * p)        # (B, C, S, S)
    return templates, confidence, prob_map


# ----------------------------------------------------------------------------
if __name__ == "__main__":
    cfg = dict(patch_size=8, embed_dim=128, num_heads=4, template_size_out=32)
    T, B = 2, 2

    rng = jax.random.PRNGKey(0)
    k1, k2, k3, k4 = jax.random.split(rng, 4)
    params = {
        "w_embed": jax.random.normal(k1, (3 * 8 * 8, 128), dtype=jnp.float32) * 0.02,
        "w_key": jax.random.normal(k2, (128, 128), dtype=jnp.float32) * 0.1,
    }
    template_imgs = jax.random.normal(k3, (T, B, 3, 64, 64), dtype=jnp.float32)
    search_frame = jax.random.normal(k4, (B, 3, 128, 128), dtype=jnp.float32)
    template_annos = jnp.array(
        [[[0.20, 0.20, 0.50, 0.50], [0.10, 0.30, 0.40, 0.40]],
         [[0.25, 0.15, 0.50, 0.60], [0.30, 0.30, 0.30, 0.30]]],
        dtype=jnp.float32)                                         # (T, B, 4)

    templates, confidence, prob_map = dora_apn_forward(
        params, template_imgs, search_frame, template_annos, cfg)
    jax.block_until_ready((templates, confidence, prob_map))

    assert templates.shape == (B, 3, cfg["template_size_out"], cfg["template_size_out"])
    assert confidence.shape == (B,)
    assert prob_map.shape == (B, 16, 16)
    print("KERNEL_OK")
</pallas_src>

<mosaic_0001>
module attributes {stable_mosaic.version = 11 : i64} {
  func.func @_matmul_kernel(%arg0: i32, %arg1: memref<128x192xbf16, #tpu.memory_space<vmem>>, %arg2: memref<192x128xbf16, #tpu.memory_space<vmem>>, %arg3: memref<128x128xbf16, #tpu.memory_space<vmem>>) attributes {dimension_semantics = [#tpu.dimension_semantics<parallel>], iteration_bounds = array<i64: 2>, scalar_prefetch = 0 : i64, scratch_operands = 0 : i64, tpu.core_type = #tpu.core_type<tc>, window_params = [{transform_indices = @transform_0, window_bounds = array<i64: 128, 192>}, {pipeline_mode = #tpu.pipeline_mode<synchronous>, transform_indices = @transform_1, window_bounds = array<i64: 192, 128>}, {transform_indices = @transform_2, window_bounds = array<i64: 128, 128>}]} {
    %c0 = arith.constant 0 : index
    %c0_0 = arith.constant 0 : index
    %0 = vector.load %arg1[%c0, %c0_0] : memref<128x192xbf16, #tpu.memory_space<vmem>>, vector<128x192xbf16>
    %c0_1 = arith.constant 0 : index
    %c0_2 = arith.constant 0 : index
    %1 = vector.load %arg2[%c0_1, %c0_2] : memref<192x128xbf16, #tpu.memory_space<vmem>>, vector<192x128xbf16>
    %cst = arith.constant dense<0.000000e+00> : vector<128x128xf32>
    %2 = tpu.matmul %0, %1, %cst {dimension_numbers = #tpu.dot_dimension_numbers<[1], [0], [0], [1], [0, 0, 1, 1], [], []>} : vector<128x192xbf16>, vector<192x128xbf16>, vector<128x128xf32> -> vector<128x128xf32>
    %3 = arith.truncf %2 : vector<128x128xf32> to vector<128x128xbf16>
    %c0_3 = arith.constant 0 : index
    %c0_4 = arith.constant 0 : index
    %4 = vector.load %arg3[%c0_3, %c0_4] : memref<128x128xbf16, #tpu.memory_space<vmem>>, vector<128x128xbf16>
    tpu.vector_store %arg3[%c0_3, %c0_4], %3 {strides = array<i32>} : memref<128x128xbf16, #tpu.memory_space<vmem>>, vector<128x128xbf16>,
    return
  }
  func.func @transform_0(%arg0: i32) -> (i32, i32) {
    %c0_i32 = arith.constant 0 : i32
    %c0_i32_0 = arith.constant 0 : i32
    return %arg0, %c0_i32 : i32, i32
  }
  func.func @transform_1(%arg0: i32) -> (i32, i32) {
    %c0_i32 = arith.constant 0 : i32
    %c0_i32_0 = arith.constant 0 : i32
    %c0_i32_1 = arith.constant 0 : i32
    return %c0_i32, %c0_i32_0 : i32, i32
  }
  func.func @transform_2(%arg0: i32) -> (i32, i32) {
    %c0_i32 = arith.constant 0 : i32
    %c0_i32_0 = arith.constant 0 : i32
    return %arg0, %c0_i32 : i32, i32
  }
}

</mosaic_0001>

<llo_original>
// kernel: tpu_custom_call.1
$region0: #{tpu_custom_call.1}
  #allocation0 [shape = 'u32[]', space=smem, size = 0x4, offset = 0x4, fixed_abs, tag = 'smem constant byte address 0x4 - core index']
  #allocation1 [shape = 'u32[144,128]{1,0:T(1,128)}', space=vmem, size = 0x12000, scoped, tag = 'internal scratch']
  %s0 = inlined_call_operand.vmem [shape: bf16[256,192], index: 0, kind: input, shape index: {}]
  %s1 = inlined_call_operand.vmem [shape: bf16[192,128], index: 1, kind: input, shape index: {}]
  %s2 = inlined_call_operand.hbm [shape: bf16[256,128], index: 2, kind: output, shape index: {}]
  %s3 = sld [smem:[#allocation0]]
  $region41: #{tpu_custom_call.1} parent=0
    _
  %s5 = ssub.s32 1, %s3
  %s6 = scalar_select 0, %s5, %s3
  $region1: #{tpu_custom_call.1} parent=0
    #allocation2 [shape = 'u8[65536]{0}', space=vmem, size = 0x10000, scoped, tag = 'output window, operand 0']
    #allocation3 [shape = 's32[2]{0}', space=sflag, size = 0x8, scoped, tag = 'scoped memory for tpu_custom_call.1']
    %7 = vsyncpa [#allocation3], 0
    %s8 = scalar_lea.sflag [#allocation3], 1
    %9 = vsyncpa %s8, 0
    loop: start=0, step=1, limit=4
    $region2: #{tpu_custom_call.1} parent=1 // loop_pre_header
      _
    $region3: #{tpu_custom_call.1} parent=1 // loop_header
      %s11 = sphi 0, %s15
      %p12 = scmp.ge.s32.totalorder %s11, 4
      %s21 = sphi 0, %s23
      %s24 = sphi 0, %s21
      %s25 = sphi 0, %s24
      %s41 = sphi 0, %s25
      %s45 = sphi 0, %s45
      %s47 = sphi 0, %s45
      %s48 = sphi 0, %s47
      %s62 = sphi 0, %s48
      %s68 = sphi 0, %s70
      %s71 = sphi 0, %s68
      %s72 = sphi 0, %s71
      %s88 = sphi 0, %s72
    $region4: #{tpu_custom_call.1} parent=1 // loop_header_branch
      %14 = sbr.rel (%p12) target = $region8
    $region5: #{tpu_custom_call.1} parent=1 // loop_body
      %s16 = ssub.s32 %s11, 1
      %s17 = ssub.s32 %s11, 2
      %s18 = sadd.s32 %s11, 1
      %s19 = ssub.s32 %s11, %s18
      %p20 = scmp.eq.s32.totalorder %s19, 0
      %s22 = sadd.s32 %s21, 1
      %s23 = scalar_select %p20, %s21, %s22
      %p26 = pneg %p20
      %p27 = scmp.eq.s32.totalorder %s11, 1
      %p28 = por %p26, %p27
      %p29 = scmp.ne.s32.totalorder %s21, %s24
      %p30 = scmp.eq.s32.totalorder %s11, 0
      %p31 = por %p29, %p30
      %p32 = scmp.ne.s32.totalorder %s21, %s24
      %p33 = scmp.eq.s32.totalorder %s16, 1
      %p34 = por %p32, %p33
      %p35 = scmp.ne.s32.totalorder %s24, %s25
      %p36 = scmp.eq.s32.totalorder %s16, 0
      %p37 = por %p35, %p36
      %p38 = scmp.ne.s32.totalorder %s24, %s25
      %p39 = scmp.eq.s32.totalorder %s17, 1
      %p40 = por %p38, %p39
      %p42 = scmp.ne.s32.totalorder %s25, %s41
      %p43 = scmp.eq.s32.totalorder %s17, 0
      %p44 = por %p42, %p43
      %s46 = sadd.s32 %s45, 1
      %p49 = scmp.eq.s32.totalorder %s11, 1
      %p50 = scmp.ne.s32.totalorder %s45, %s47
      %p51 = scmp.eq.s32.totalorder %s11, 0
      %p52 = por %p50, %p51
      %p53 = scmp.ne.s32.totalorder %s45, %s47
      %p54 = scmp.eq.s32.totalorder %s16, 1
      %p55 = por %p53, %p54
      %p56 = scmp.ne.s32.totalorder %s47, %s48
      %p57 = scmp.eq.s32.totalorder %s16, 0
      %p58 = por %p56, %p57
      %p59 = scmp.ne.s32.totalorder %s47, %s48
      %p60 = scmp.eq.s32.totalorder %s17, 1
      %p61 = por %p59, %p60
      %p63 = scmp.ne.s32.totalorder %s48, %s62
      %p64 = scmp.eq.s32.totalorder %s17, 0
      %p65 = por %p63, %p64
      %s66 = ssub.s32 %s11, %s18
      %p67 = scmp.eq.s32.totalorder %s66, 0
      %s69 = sadd.s32 %s68, 1
      %s70 = scalar_select %p67, %s68, %s69
      %p73 = pneg %p67
      %p74 = scmp.eq.s32.totalorder %s11, 1
      %p75 = por %p73, %p74
      %p76 = scmp.ne.s32.totalorder %s68, %s71
      %p77 = scmp.eq.s32.totalorder %s11, 0
      %p78 = por %p76, %p77
      %p79 = scmp.ne.s32.totalorder %s68, %s71
      %p80 = scmp.eq.s32.totalorder %s16, 1
      %p81 = por %p79, %p80
      %p82 = scmp.ne.s32.totalorder %s71, %s72
      %p83 = scmp.eq.s32.totalorder %s16, 0
      %p84 = por %p82, %p83
      %p85 = scmp.ne.s32.totalorder %s71, %s72
      %p86 = scmp.eq.s32.totalorder %s17, 1
      %p87 = por %p85, %p86
      %p89 = scmp.ne.s32.totalorder %s72, %s88
      %p90 = scmp.eq.s32.totalorder %s17, 0
      %p91 = por %p89, %p90
      %p92 = scmp.le.s32.totalorder 1, %s11
      %p93 = scmp.lt.s32.totalorder %s11, 3
      %p94 = pnand %p92, %p93
      %p95 = pneg %p94
      // Predicated region
      $region9: #{tpu_custom_call.1} parent=5 // pred_check
        _
      $region10: #{tpu_custom_call.1} parent=5 // pred_check_branch
        %97 = sbr.rel (%p94) target = $region12
      $region11: #{tpu_custom_call.1} parent=5 // pred_region
        %s98 = ssub.s32 %s11, 1
        // Predicated region
        $region13: #{tpu_custom_call.1} parent=11 // pred_check
          %p99 = pneg %p58
        $region14: #{tpu_custom_call.1} parent=11 // pred_check_branch
          %101 = sbr.rel (%p99) target = $region16
        $region15: #{tpu_custom_call.1} parent=11 // pred_region
          _
        $region16: #{tpu_custom_call.1} parent=11 // pred_fallthru
          _
      $region12: #{tpu_custom_call.1} parent=5 // pred_fallthru
        _
      %p102 = scmp.lt.s32.totalorder %s11, 2
      // Predicated region
      $region17: #{tpu_custom_call.1} parent=5 // pred_check
        %p103 = pneg %p102
      $region18: #{tpu_custom_call.1} parent=5 // pred_check_branch
        %105 = sbr.rel (%p103) target = $region20
      $region19: #{tpu_custom_call.1} parent=5 // pred_region
        // Predicated region
        $region21: #{tpu_custom_call.1} parent=19 // pred_check
          %p106 = pneg %p31
        $region22: #{tpu_custom_call.1} parent=19 // pred_check_branch
          %108 = sbr.rel (%p106) target = $region24
        $region23: #{tpu_custom_call.1} parent=19 // pred_region
          %s109 = smul.u32 16, %s11
          %p110 = scmp.lt.s32.totalorder %s109, 31
          %s111 = scalar_select %p110, %s109, 31
          %s112 = smul.addr %s111, 2
          %s113 = smul.addr %s112, 4
          %s114 = scalar_lea.vmem %s0, %s113
          %s115 = smul.u32 16, %s11
        $region24: #{tpu_custom_call.1} parent=19 // pred_fallthru
          _
      $region20: #{tpu_custom_call.1} parent=5 // pred_fallthru
        _
      %p116 = scmp.le.s32.totalorder 1, %s11
      %p117 = scmp.lt.s32.totalorder %s11, 3
      %p118 = pnand %p116, %p117
      %p119 = pneg %p118
      // Predicated region
      $region25: #{tpu_custom_call.1} parent=5 // pred_check
        _
      $region26: #{tpu_custom_call.1} parent=5 // pred_check_branch
        %121 = sbr.rel (%p118) target = $region28
      $region27: #{tpu_custom_call.1} parent=5 // pred_region
        %s122 = ssub.s32 %s11, 1
        %s123 = smul.u32 16, %s16
        %p124 = scmp.lt.s32.totalorder %s123, 31
        %s125 = scalar_select %p124, %s123, 31
        %s126 = smul.addr %s125, 2
        %s127 = smul.addr %s126, 4
        %s128 = scalar_lea.vmem %s0, %s127
        %p129 = pneg %p37
        %p130 = pneg %p34
        %p131 = pneg %p58
        %p132 = pneg %p55
        %p133 = pneg %p84
        %p134 = pneg %p81
        %s135 = sand.u32 %s71, 1
        %s136 = scalar_lea.sflag [#allocation3], %s135
        %s137 = sand.u32 %s71, 1
        %s138 = smul.addr %s137, 64
        %s139 = scalar_lea.vmem [#allocation2], %s138
        %s140 = smul.u32 16, %s16
        %p141 = scmp.lt.s32.totalorder %s140, 31
        %s142 = scalar_select %p141, %s140, 31
        %s143 = smul.addr %s142, 2
        %s144 = smul.addr %s143, 4
        %s145 = scalar_lea.vmem %s0, %s144
        %s146 = smul.u32 16, %s16
        %s147 = smul.u32 16, %s16
        %v149 = vld [vmem:[%s145] sm:$0xff]
        %v150 = vld [vmem:[%s145 + $0x8] sm:$0xff]
        %v151 = vld [vmem:[%s145 + $0x10] sm:$0xff]
        %v152 = vld [vmem:[%s145 + $0x18] sm:$0xff]
        %v153 = vld [vmem:[%s145 + $0x20] sm:$0xff]
        %v154 = vld [vmem:[%s145 + $0x28] sm:$0xff]
        %v155 = vld [vmem:[%s145 + $0x30] sm:$0xff]
        %v156 = vld [vmem:[%s145 + $0x38] sm:$0xff]
        %v157 = vld [vmem:[%s145 + $0x40] sm:$0xff]
        %v158 = vld [vmem:[%s145 + $0x48] sm:$0xff]
        %v159 = vld [vmem:[%s145 + $0x50] sm:$0xff]
        %v160 = vld [vmem:[%s145 + $0x58] sm:$0xff]
        %v161 = vld [vmem:[%s145 + $0x60] sm:$0xff]
        %v162 = vld [vmem:[%s145 + $0x68] sm:$0xff]
        %v163 = vld [vmem:[%s145 + $0x70] sm:$0xff]
        %v164 = vld [vmem:[%s145 + $0x78] sm:$0xff]
        %v165 = vld [vmem:[%s1] sm:$0xf]
        %v166 = vld [vmem:[%s1 + $0x4] sm:$0xf]
        %v167 = vld [vmem:[%s1 + $0x8] sm:$0xf]
        %v168 = vld [vmem:[%s1 + $0xc] sm:$0xf]
        %v169 = vld [vmem:[%s1 + $0x10] sm:$0xf]
        %v170 = vld [vmem:[%s1 + $0x14] sm:$0xf]
        %v171 = vld [vmem:[%s1 + $0x18] sm:$0xf]
        %v172 = vld [vmem:[%s1 + $0x1c] sm:$0xf]
        %v173 = vld [vmem:[%s1 + $0x20] sm:$0xf]
        %v174 = vld [vmem:[%s1 + $0x24] sm:$0xf]
        %v175 = vld [vmem:[%s1 + $0x28] sm:$0xf]
        %v176 = vld [vmem:[%s1 + $0x2c] sm:$0xf]
        %v177 = vld [vmem:[%s1 + $0x30] sm:$0xf]
        %v178 = vld [vmem:[%s1 + $0x34] sm:$0xf]
        %v179 = vld [vmem:[%s1 + $0x38] sm:$0xf]
        %v180 = vld [vmem:[%s1 + $0x3c] sm:$0xf]
        %v181 = vld [vmem:[%s1 + $0x40] sm:$0xf]
        %v182 = vld [vmem:[%s1 + $0x44] sm:$0xf]
        %v183 = vld [vmem:[%s1 + $0x48] sm:$0xf]
        %v184 = vld [vmem:[%s1 + $0x4c] sm:$0xf]
        %v185 = vld [vmem:[%s1 + $0x50] sm:$0xf]
        %v186 = vld [vmem:[%s1 + $0x54] sm:$0xf]
        %v187 = vld [vmem:[%s1 + $0x58] sm:$0xf]
        %v188 = vld [vmem:[%s1 + $0x5c] sm:$0xf]
        %v205 = vunpack.c.l.b16 %v149
        %v206 = vunpack.c.h.b16 %v149
        %v207 = vunpack.c.l.b16 %v150
        %v208 = vunpack.c.h.b16 %v150
        %v209 = vunpack.c.l.b16 %v151
        %v210 = vunpack.c.h.b16 %v151
        %v211 = vunpack.c.l.b16 %v152
        %v212 = vunpack.c.h.b16 %v152
        %v213 = vunpack.c.l.b16 %v153
        %v214 = vunpack.c.h.b16 %v153
        %v215 = vunpack.c.l.b16 %v154
        %v216 = vunpack.c.h.b16 %v154
        %v217 = vunpack.c.l.b16 %v155
        %v218 = vunpack.c.h.b16 %v155
        %v219 = vunpack.c.l.b16 %v156
        %v220 = vunpack.c.h.b16 %v156
        %v221 = vunpack.c.l.b16 %v157
        %v222 = vunpack.c.h.b16 %v157
        %v223 = vunpack.c.l.b16 %v158
        %v224 = vunpack.c.h.b16 %v158
        %v225 = vunpack.c.l.b16 %v159
        %v226 = vunpack.c.h.b16 %v159
        %v227 = vunpack.c.l.b16 %v160
        %v228 = vunpack.c.h.b16 %v160
        %v229 = vunpack.c.l.b16 %v161
        %v230 = vunpack.c.h.b16 %v161
        %v231 = vunpack.c.l.b16 %v162
        %v232 = vunpack.c.h.b16 %v162
        %v233 = vunpack.c.l.b16 %v163
        %v234 = vunpack.c.h.b16 %v163
        %v235 = vunpack.c.l.b16 %v164
        %v236 = vunpack.c.h.b16 %v164
        %v237 = vpack.c.b16 %v207, %v205
        %v238 = vpack.c.b16 %v208, %v206
        %v239 = vpack.c.b16 %v211, %v209
        %v240 = vpack.c.b16 %v212, %v210
        %v241 = vpack.c.b16 %v215, %v213
        %v242 = vpack.c.b16 %v216, %v214
        %v243 = vpack.c.b16 %v219, %v217
        %v244 = vpack.c.b16 %v220, %v218
        %v245 = vpack.c.b16 %v223, %v221
        %v246 = vpack.c.b16 %v224, %v222
        %v247 = vpack.c.b16 %v227, %v225
        %v248 = vpack.c.b16 %v228, %v226
        %v249 = vpack.c.b16 %v231, %v229
        %v250 = vpack.c.b16 %v232, %v230
        %v251 = vpack.c.b16 %v235, %v233
        %v252 = vpack.c.b16 %v236, %v234
        %v285 = vunpack.c.l.b16 %v165
        %v286 = vunpack.c.l.b16 %v166
        %v287 = vunpack.c.l.b16 %v167
        %v288 = vunpack.c.l.b16 %v168
        %v289 = vunpack.c.l.b16 %v169
        %v290 = vunpack.c.l.b16 %v170
        %v291 = vunpack.c.l.b16 %v171
        %v292 = vunpack.c.l.b16 %v172
        %v293 = vunpack.c.l.b16 %v173
        %v294 = vunpack.c.l.b16 %v174
        %v295 = vunpack.c.l.b16 %v175
        %v296 = vunpack.c.l.b16 %v176
        %v297 = vunpack.c.l.b16 %v177
        %v298 = vunpack.c.l.b16 %v178
        %v299 = vunpack.c.l.b16 %v179
        %v300 = vunpack.c.l.b16 %v180
        %v301 = vunpack.c.l.b16 %v181
        %v302 = vunpack.c.l.b16 %v182
        %v303 = vunpack.c.l.b16 %v183
        %v304 = vunpack.c.l.b16 %v184
        %v305 = vunpack.c.l.b16 %v185
        %v306 = vunpack.c.l.b16 %v186
        %v307 = vunpack.c.l.b16 %v187
        %v308 = vunpack.c.l.b16 %v188
        %v309 = vpack.c.b16 %v286, %v285
        %v310 = vpack.c.b16 %v288, %v287
        %v311 = vpack.c.b16 %v290, %v289
        %v312 = vpack.c.b16 %v292, %v291
        %v313 = vpack.c.b16 %v294, %v293
        %v314 = vpack.c.b16 %v296, %v295
        %v315 = vpack.c.b16 %v298, %v297
        %v316 = vpack.c.b16 %v300, %v299
        %v317 = vpack.c.b16 %v302, %v301
        %v318 = vpack.c.b16 %v304, %v303
        %v319 = vpack.c.b16 %v306, %v305
        %v320 = vpack.c.b16 %v308, %v307
        %vm333 = vcmask 523264
        %v335 = vsel %vm333, %v238, 0
        %v338 = vsel %vm333, %v240, 0
        %v341 = vsel %vm333, %v242, 0
        %v344 = vsel %vm333, %v244, 0
        %v347 = vsel %vm333, %v246, 0
        %v350 = vsel %vm333, %v248, 0
        %v353 = vsel %vm333, %v250, 0
        %v356 = vsel %vm333, %v252, 0
        %358 = vmatprep.subr.bf16.mxu0 0
        %359 = vmatpush1.bf16.msra.mxu0 %v309
        %360 = vmatprep.subr.bf16.mxu0 0
        %361 = vmatpush1.bf16.msra.mxu0 %v310
        %362 = vmatprep.subr.bf16.mxu0 0
        %363 = vmatpush1.bf16.msra.mxu0 %v311
        %364 = vmatprep.subr.bf16.mxu0 0
        %365 = vmatpush1.bf16.msra.mxu0 %v312
        %366 = vmatprep.subr.bf16.mxu0 0
        %367 = vmatpush1.bf16.msra.mxu0 %v313
        %368 = vmatprep.subr.bf16.mxu0 0
        %369 = vmatpush1.bf16.msra.mxu0 %v314
        %370 = vmatprep.subr.bf16.mxu0 0
        %371 = vmatpush1.bf16.msra.mxu0 %v315
        %372 = vmatprep.subr.bf16.mxu0 0
        %373 = vmatpush1.bf16.msra.mxu0 %v316
        %374 = vmatprep.subr.bf16.mxu0 0
        %375 = vmatpush1.bf16.msra.mxu0 %v317
        %376 = vmatprep.subr.bf16.mxu0 0
        %377 = vmatpush1.bf16.msra.mxu0 %v318
        %378 = vmatprep.subr.bf16.mxu0 0
        %379 = vmatpush1.bf16.msra.mxu0 %v319
        %380 = vmatprep.subr.bf16.mxu0 0
        %381 = vmatpush1.bf16.msra.mxu0 %v320
        %382 = vmatprep.subr.bf16.mxu0 0
        %383 = vmatpush1.bf16.msra.mxu0 0
        %384 = vmatprep.subr.bf16.mxu0 0
        %385 = vmatpush1.bf16.msra.mxu0 0
        %386 = vmatprep.subr.bf16.mxu0 0
        %387 = vmatpush1.bf16.msra.mxu0 0
        %388 = vmatprep.subr.bf16.mxu0 0
        %389 = vmatpush1.bf16.msra.mxu0 0
        %390 = vmatprep.mubr.bf16.mxu0 %v335
        %391 = vmatmul.mubr.bf16.gmra.mrb[0].mxu0 %v237
        %v392 = vpop.f32.mrb[0].mxu0
        %v393 = vadd.f32 0.0, %v392
        %v394 = vpop.f32.mrb[0].mxu0
        %v395 = vpop.f32.mrb[0].mxu0
        %v396 = vadd.f32 0.0, %v395
        %v397 = vpop.f32.mrb[0].mxu0
        %398 = vmatprep.mubr.bf16.mxu0 %v338
        %399 = vmatmul.mubr.bf16.gmra.mrb[0].mxu0 %v239
        %v400 = vpop.f32.mrb[0].mxu0
        %v401 = vadd.f32 0.0, %v400
        %v402 = vpop.f32.mrb[0].mxu0
        %v403 = vpop.f32.mrb[0].mxu0
        %v404 = vadd.f32 0.0, %v403
        %v405 = vpop.f32.mrb[0].mxu0
        %406 = vmatprep.mubr.bf16.mxu0 %v341
        %407 = vmatmul.mubr.bf16.gmra.mrb[0].mxu0 %v241
        %v408 = vpop.f32.mrb[0].mxu0
        %v409 = vadd.f32 0.0, %v408
        %v410 = vpop.f32.mrb[0].mxu0
        %v411 = vpop.f32.mrb[0].mxu0
        %v412 = vadd.f32 0.0, %v411
        %v413 = vpop.f32.mrb[0].mxu0
        %414 = vmatprep.mubr.bf16.mxu0 %v344
        %415 = vmatmul.mubr.bf16.gmra.mrb[0].mxu0 %v243
        %v416 = vpop.f32.mrb[0].mxu0
        %v417 = vadd.f32 0.0, %v416
        %v418 = vpop.f32.mrb[0].mxu0
        %v419 = vpop.f32.mrb[0].mxu0
        %v420 = vadd.f32 0.0, %v419
        %v421 = vpop.f32.mrb[0].mxu0
        %422 = vmatprep.mubr.bf16.mxu0 %v347
        %423 = vmatmul.mubr.bf16.gmra.mrb[0].mxu0 %v245
        %v424 = vpop.f32.mrb[0].mxu0
        %v425 = vadd.f32 0.0, %v424
        %v426 = vpop.f32.mrb[0].mxu0
        %v427 = vpop.f32.mrb[0].mxu0
        %v428 = vadd.f32 0.0, %v427
        %v429 = vpop.f32.mrb[0].mxu0
        %430 = vmatprep.mubr.bf16.mxu0 %v350
        %431 = vmatmul.mubr.bf16.gmra.mrb[0].mxu0 %v247
        %v432 = vpop.f32.mrb[0].mxu0
        %v433 = vadd.f32 0.0, %v432
        %v434 = vpop.f32.mrb[0].mxu0
        %v435 = vpop.f32.mrb[0].mxu0
        %v436 = vadd.f32 0.0, %v435
        %v437 = vpop.f32.mrb[0].mxu0
        %438 = vmatprep.mubr.bf16.mxu0 %v353
        %439 = vmatmul.mubr.bf16.gmra.mrb[0].mxu0 %v249
        %v440 = vpop.f32.mrb[0].mxu0
        %v441 = vadd.f32 0.0, %v440
        %v442 = vpop.f32.mrb[0].mxu0
        %v443 = vpop.f32.mrb[0].mxu0
        %v444 = vadd.f32 0.0, %v443
        %v445 = vpop.f32.mrb[0].mxu0
        %446 = vmatprep.mubr.bf16.mxu0 %v356
        %447 = vmatmul.mubr.bf16.gmra.mrb[0].mxu0 %v251
        %v448 = vpop.f32.mrb[0].mxu0
        %v449 = vadd.f32 0.0, %v448
        %v450 = vpop.f32.mrb[0].mxu0
        %v451 = vpop.f32.mrb[0].mxu0
        %v452 = vadd.f32 0.0, %v451
        %v453 = vpop.f32.mrb[0].mxu0
        %454 = vdwg.mxu0
        %v455 = vpack.c.bf16 %v396, %v393
        %v456 = vpack.c.bf16 %v404, %v401
        %v457 = vpack.c.bf16 %v412, %v409
        %v458 = vpack.c.bf16 %v420, %v417
        %v459 = vpack.c.bf16 %v428, %v425
        %v460 = vpack.c.bf16 %v436, %v433
        %v461 = vpack.c.bf16 %v444, %v441
        %v462 = vpack.c.bf16 %v452, %v449
        %v471 = vunpack.c.l.b16 %v455
        %v472 = vunpack.c.h.b16 %v455
        %v473 = vunpack.c.l.b16 %v456
        %v474 = vunpack.c.h.b16 %v456
        %v475 = vunpack.c.l.b16 %v457
        %v476 = vunpack.c.h.b16 %v457
        %v477 = vunpack.c.l.b16 %v458
        %v478 = vunpack.c.h.b16 %v458
        %v479 = vunpack.c.l.b16 %v459
        %v480 = vunpack.c.h.b16 %v459
        %v481 = vunpack.c.l.b16 %v460
        %v482 = vunpack.c.h.b16 %v460
        %v483 = vunpack.c.l.b16 %v461
        %v484 = vunpack.c.h.b16 %v461
        %v485 = vunpack.c.l.b16 %v462
        %v486 = vunpack.c.h.b16 %v462
        %v487 = vpack.c.b16 %v471, %v471
        %v488 = vpack.c.b16 %v472, %v472
        %v489 = vpack.c.b16 %v473, %v473
        %v490 = vpack.c.b16 %v474, %v474
        %v491 = vpack.c.b16 %v475, %v475
        %v492 = vpack.c.b16 %v476, %v476
        %v493 = vpack.c.b16 %v477, %v477
        %v494 = vpack.c.b16 %v478, %v478
        %v495 = vpack.c.b16 %v479, %v479
        %v496 = vpack.c.b16 %v480, %v480
        %v497 = vpack.c.b16 %v481, %v481
        %v498 = vpack.c.b16 %v482, %v482
        %v499 = vpack.c.b16 %v483, %v483
        %v500 = vpack.c.b16 %v484, %v484
        %v501 = vpack.c.b16 %v485, %v485
        %v502 = vpack.c.b16 %v486, %v486
        %519 = vst [vmem:[%s139] sm:$0xf] %v487
        %520 = vst [vmem:[%s139 + $0x4] sm:$0xf] %v488
        %521 = vst [vmem:[%s139 + $0x8] sm:$0xf] %v489
        %522 = vst [vmem:[%s139 + $0xc] sm:$0xf] %v490
        %523 = vst [vmem:[%s139 + $0x10] sm:$0xf] %v491
        %524 = vst [vmem:[%s139 + $0x14] sm:$0xf] %v492
        %525 = vst [vmem:[%s139 + $0x18] sm:$0xf] %v493
        %526 = vst [vmem:[%s139 + $0x1c] sm:$0xf] %v494
        %527 = vst [vmem:[%s139 + $0x20] sm:$0xf] %v495
        %528 = vst [vmem:[%s139 + $0x24] sm:$0xf] %v496
        %529 = vst [vmem:[%s139 + $0x28] sm:$0xf] %v497
        %530 = vst [vmem:[%s139 + $0x2c] sm:$0xf] %v498
        %531 = vst [vmem:[%s139 + $0x30] sm:$0xf] %v499
        %532 = vst [vmem:[%s139 + $0x34] sm:$0xf] %v500
        %533 = vst [vmem:[%s139 + $0x38] sm:$0xf] %v501
        %534 = vst [vmem:[%s139 + $0x3c] sm:$0xf] %v502
        %s535 = sand.u32 %s71, 1
        %s536 = scalar_lea.sflag [#allocation3], %s535
        %s537 = sand.u32 %s71, 1
        %s538 = smul.addr %s537, 64
        %s539 = scalar_lea.vmem [#allocation2], %s538
        // Predicated region
        $region29: #{tpu_custom_call.1} parent=27 // pred_check
          %p540 = pneg %p81
        $region30: #{tpu_custom_call.1} parent=27 // pred_check_branch
          %542 = sbr.rel (%p540) target = $region32
        $region31: #{tpu_custom_call.1} parent=27 // pred_region
          %s543 = smul.u32 16, %s16
          %s545 = ssub.s32 1024, 1024
          %546 = vsyncadd %s536, %s545
          %s547 = smul.addr %s543, 64
          %s548 = scalar_lea.hbm %s2, %s547
          %s549 = sshll.u32 %s539, 4
          %s550 = int_to_ptr.vmem [resolvable:$true] %s549
          %555 = dma.vmem_to_hbm [thread:$0]  %s550, 1024, %s548, %s536, 64, 64, 4
        $region32: #{tpu_custom_call.1} parent=27 // pred_fallthru
          _
      $region28: #{tpu_custom_call.1} parent=5 // pred_fallthru
        _
      %p556 = scmp.le.s32.totalorder 2, %s11
      // Predicated region
      $region33: #{tpu_custom_call.1} parent=5 // pred_check
        %p557 = pneg %p556
      $region34: #{tpu_custom_call.1} parent=5 // pred_check_branch
        %559 = sbr.rel (%p557) target = $region36
      $region35: #{tpu_custom_call.1} parent=5 // pred_region
        %s560 = ssub.s32 %s11, 2
        // Predicated region
        $region37: #{tpu_custom_call.1} parent=35 // pred_check
          %p561 = pneg %p87
        $region38: #{tpu_custom_call.1} parent=35 // pred_check_branch
          %563 = sbr.rel (%p561) target = $region40
        $region39: #{tpu_custom_call.1} parent=35 // pred_region
          %s564 = sand.u32 %s72, 1
          %s565 = scalar_lea.sflag [#allocation3], %s564
          %s566 = sand.u32 %s72, 1
          %s567 = smul.addr %s566, 64
          %s568 = scalar_lea.vmem [#allocation2], %s567
          %569 = dma.done %s565, 1024
        $region40: #{tpu_custom_call.1} parent=35 // pred_fallthru
          _
      $region36: #{tpu_custom_call.1} parent=5 // pred_fallthru
        _
    $region6: #{tpu_custom_call.1} parent=1 // loop_footer
      %s15 = sadd.s32 1, %s11
    $region7: #{tpu_custom_call.1} parent=1 // loop_footer_branch
      %10 = sbr.rel target = $region3
    $region8: #{tpu_custom_call.1} parent=1 // loop_exit
      _
    %570 = vsyncpa [#allocation3], 1
    %s571 = scalar_lea.sflag [#allocation3], 1
    %572 = vsyncpa %s571, 1

</llo_original>
